<compile_context>
chip_gen: v7x
topology: tpu7x:2x2x1
jax: 0.10.0
libtpu: 0.0.40
codegen_flags: <defaults>
</compile_context>

<pallas_src>
import functools

import jax
import jax.numpy as jnp
from jax.experimental import pallas as pl
from jax.experimental.pallas import tpu as pltpu


def _round_up(a: int, b: int) -> int:
    return (a + b - 1) // b * b


def _device_info():
    """Returns (vmem_bytes, num_tensorcores, is_v5e_class) with safe fallbacks."""
    kind = ""
    try:
        kind = jax.devices()[0].device_kind.lower()
    except Exception:
        pass
    multi_tc = any(t in kind for t in ("v7", "v5p", "v4"))
    is_v5e = ("lite" in kind) or ("v5" in kind and not multi_tc)
    vmem_bytes = None
    try:
        vmem_bytes = int(getattr(pltpu.get_tpu_info(), "vmem_capacity_bytes"))
    except Exception:
        vmem_bytes = None
    if not vmem_bytes or vmem_bytes <= 0:
        vmem_bytes = (64 << 20) if "v7" in kind else (128 << 20)
    return vmem_bytes, (2 if multi_tc else 1), is_v5e


def _ffn_kernel(x_ref, w1_ref, b1_ref, w2_ref, b2_ref, gamma_ref, beta_ref,
                o_ref, acc_ref, *opt_scratch, eps: float, inv_d: float):
    # Grid: (row_tiles, hidden_tiles). Hidden axis is a reduction ("arbitrary"): the
    # output block index is constant across it and acc_ref carries the partial fc2 sum.
    k = pl.program_id(1)
    xmm_ref = opt_scratch[0] if opt_scratch else None  # hoisted-cast scratch when nk > 1

    @pl.when(k == 0)
    def _init():
        acc_ref[...] = jnp.zeros_like(acc_ref)
        if xmm_ref is not None:
            # Cast the x row tile to the matmul dtype once and reuse it for every
            # hidden chunk (instead of re-packing f32->bf16 each k step).
            xmm_ref[...] = x_ref[...].astype(xmm_ref.dtype)

    x_mm = xmm_ref[...] if xmm_ref is not None else x_ref[...].astype(w1_ref.dtype)
    # fc1 chunk + bias + ReLU (MXU matmul, f32 accumulation), then partial fc2.
    h = jnp.dot(x_mm, w1_ref[...], preferred_element_type=jnp.float32)
    h = jnp.maximum(h + b1_ref[...], 0.0)
    acc_ref[...] += jnp.dot(h.astype(w2_ref.dtype), w2_ref[...],
                            preferred_element_type=jnp.float32)

    @pl.when(k == pl.num_programs(1) - 1)
    def _finalize():
        # fc2 bias + dropout(p=0 -> identity) + residual + LayerNorm.
        # Padded feature columns are exactly zero (zero weights / biases / x columns),
        # so a single-pass sum / sum-of-squares with the true-D divisor is exact.
        y = acc_ref[...] + b2_ref[...] + x_ref[...].astype(jnp.float32)
        s1 = jnp.sum(y, axis=-1, keepdims=True)
        s2 = jnp.sum(y * y, axis=-1, keepdims=True)
        mean = s1 * inv_d
        var = jnp.maximum(s2 * inv_d - mean * mean, 0.0)
        out = (y - mean) * jax.lax.rsqrt(var + eps) * gamma_ref[...] + beta_ref[...]
        o_ref[...] = out.astype(o_ref.dtype)


def position_wise_feed_forward(x, w1, b1, w2, b2, gamma, beta, *,
                               eps: float = 1e-5,
                               row_tile: int | None = None,
                               hidden_tile: int | None = None,
                               matmul_dtype=jnp.bfloat16):
    """x: [batch, seq, dim_model] -> [batch, seq, dim_model].

    Weights are stored [in, out] (transposed from PyTorch's nn.Linear), so the kernel
    does plain row-major matmuls equivalent to x @ W.T + b. Matmuls use `matmul_dtype`
    operands with f32 accumulation (pass matmul_dtype=jnp.float32 for full-f32 parity).
    """
    B, S, D = x.shape
    Din, H = w1.shape
    assert Din == D and w2.shape == (H, D) and b1.shape == (H,) and b2.shape == (D,)
    N = B * S
    msize = jnp.dtype(matmul_dtype).itemsize
    xsize = jnp.dtype(x.dtype).itemsize

    vmem_bytes, num_tc, is_v5e = _device_info()
    big_vmem = vmem_bytes >= (96 << 20)
    usable_vmem = vmem_bytes - (12 << 20)   # leave headroom for compiler-internal scratch

    # ---- lane-dense feature dim: pad D to a multiple of 128 (unmasked stores) ----
    D_pad = _round_up(D, 128)

    # ---- hidden tiling (fc1 output / fc2 reduction dim) ----
    # Prefer fully-resident W1/W2 (weights cross HBM exactly once for the whole kernel)
    # under a generation-aware slab budget; otherwise stream MXU-width-aligned chunks.
    if hidden_tile is None:
        h_align = 128 if is_v5e else 256          # 4x128^2 MXU on v5e, 2x256^2 on v6e/v7x
        full_budget = (40 << 20) if big_vmem else (16 << 20)
        chunk_budget = (20 << 20) if big_vmem else (9 << 20)
        if 2 * D_pad * H * msize <= full_budget:
            hidden_tile = H
        else:
            max_h = chunk_budget // max(1, 2 * D_pad * msize)
            hidden_tile = max(h_align, (max_h // h_align) * h_align)
    hidden_tile = int(hidden_tile)
    if hidden_tile >= H:
        hidden_tile = H
        h_pad = H
    else:
        assert hidden_tile % 128 == 0, "hidden_tile must be a multiple of 128 when < H"
        h_pad = _round_up(H, hidden_tile)
    nk = h_pad // hidden_tile

    # Weight buffering depth (conservative: assume the single-buffer hint may not apply).
    w_bufs = 3 if (is_v5e and nk > 1) else 2

    # ---- row tiling (M dim of both matmuls) ----
    if row_tile is None:
        if nk > 1:
            # Weights are re-streamed once per row tile -> pick row_tile past the
            # MXU/HBM crossover (~680 flop/B on v6e, ~310 on v7x, ~240 on v5e).
            row_tile = 1024 if (big_vmem and not is_v5e) else (384 if is_v5e else 512)
        else:
            row_tile = 512 if big_vmem else 384
    row_tile = _round_up(max(8, int(row_tile)), 8)
    if num_tc >= 2:
        # Keep >= num_tc row steps so the "parallel" axis can shard across TensorCores.
        row_tile = min(row_tile, _round_up(pl.cdiv(N, num_tc), 8))
    row_tile = min(row_tile, _round_up(N, 8))

    def _vmem_est(rt):
        return (w_bufs * 2 * D_pad * hidden_tile * msize       # W1 + W2 chunk buffers
                + w_bufs * hidden_tile * 4 + 6 * D_pad * 4     # b1 chunk + b2/gamma/beta
                + 2 * rt * D_pad * xsize                       # x tile (double-buffered)
                + 2 * rt * D_pad * xsize                       # out tile (double-buffered)
                + rt * D_pad * 4                               # f32 accumulator scratch
                + (rt * D_pad * msize if nk > 1 else 0)        # hoisted x-cast scratch
                + rt * hidden_tile * (4 + msize))              # h intermediate (f32 + cast)

    while row_tile > 64 and _vmem_est(row_tile) > int(0.8 * usable_vmem):
        row_tile = _round_up(row_tile // 2, 8)
    vmem_est = _vmem_est(row_tile)
    vmem_limit = int(min(max(int(1.5 * vmem_est), 32 << 20), usable_vmem))

    # Pad rows so the row-tile count divides evenly across TensorCores (v7x/v5p/v4).
    n_pad = _round_up(N, row_tile * num_tc)
    n_row_tiles = n_pad // row_tile

    # ---- host-side layout / dtype prep ----
    x2d = x.reshape(N, D)
    if n_pad != N or D_pad != D:
        x2d = jnp.pad(x2d, ((0, n_pad - N), (0, D_pad - D)))
    w1c = w1.astype(matmul_dtype)
    w2c = w2.astype(matmul_dtype)
    b1r = b1.reshape(1, H).astype(jnp.float32)
    b2r = b2.reshape(1, D).astype(jnp.float32)
    gamma_r = gamma.reshape(1, D).astype(jnp.float32)
    beta_r = beta.reshape(1, D).astype(jnp.float32)
    # Zero hidden padding: relu(0 + 0) = 0 contributes nothing to fc2.
    # Zero feature padding: padded y columns are exactly 0 -> LN stats stay exact.
    if h_pad != H or D_pad != D:
        w1c = jnp.pad(w1c, ((0, D_pad - D), (0, h_pad - H)))
        w2c = jnp.pad(w2c, ((0, h_pad - H), (0, D_pad - D)))
        b1r = jnp.pad(b1r, ((0, 0), (0, h_pad - H)))
        b2r = jnp.pad(b2r, ((0, 0), (0, D_pad - D)))
        gamma_r = jnp.pad(gamma_r, ((0, 0), (0, D_pad - D)))
        beta_r = jnp.pad(beta_r, ((0, 0), (0, D_pad - D)))

    # ---- advisory cost estimate (weights re-streamed per row tile when nk > 1) ----
    weight_bytes = 2 * D_pad * h_pad * msize
    weight_stream = weight_bytes * (1 if nk == 1 else n_row_tiles)
    cost = pl.CostEstimate(
        flops=int(4 * n_pad * D_pad * h_pad),          # two matmuls, 2*N*D*H each
        transcendentals=int(n_pad),                    # one rsqrt per row
        bytes_accessed=int(2 * n_pad * D_pad * xsize + weight_stream
                           + (h_pad + 3 * D_pad) * 4),
    )

    kernel = functools.partial(_ffn_kernel, eps=float(eps), inv_d=1.0 / float(D))
    scratch_shapes = [pltpu.VMEM((row_tile, D_pad), jnp.float32)]   # f32 fc2 accumulator
    if nk > 1:
        scratch_shapes.append(pltpu.VMEM((row_tile, D_pad), matmul_dtype))  # hoisted cast

    def _call(use_buffer_hints: bool):
        def _mode(n):
            return {"pipeline_mode": pl.Buffered(n)} if use_buffer_hints else {}
        const_mode = _mode(1)              # block index constant across the whole grid
        if nk == 1:
            w_mode = _mode(1)              # fully-resident weights, DMA'd exactly once
        elif is_v5e:
            w_mode = _mode(3)              # deeper buffering hides v5e's slow-HBM bubbles
        else:
            w_mode = {}                    # default double-buffered weight stream
        in_specs = [
            pl.BlockSpec((row_tile, D_pad), lambda i, k: (i, 0)),                 # x rows
            pl.BlockSpec((D_pad, hidden_tile), lambda i, k: (0, k), **w_mode),    # W1 chunk
            pl.BlockSpec((1, hidden_tile), lambda i, k: (0, k), **w_mode),        # b1 chunk
            pl.BlockSpec((hidden_tile, D_pad), lambda i, k: (k, 0), **w_mode),    # W2 chunk
            pl.BlockSpec((1, D_pad), lambda i, k: (0, 0), **const_mode),          # b2
            pl.BlockSpec((1, D_pad), lambda i, k: (0, 0), **const_mode),          # gamma
            pl.BlockSpec((1, D_pad), lambda i, k: (0, 0), **const_mode),          # beta
        ]
        out_specs = pl.BlockSpec((row_tile, D_pad), lambda i, k: (i, 0))
        return pl.pallas_call(
            kernel,
            out_shape=jax.ShapeDtypeStruct((n_pad, D_pad), x.dtype),
            grid_spec=pltpu.PrefetchScalarGridSpec(
                num_scalar_prefetch=0,
                grid=(n_row_tiles, nk),
                in_specs=in_specs,
                out_specs=out_specs,
                scratch_shapes=scratch_shapes,
            ),
            compiler_params=pltpu.CompilerParams(
                dimension_semantics=("parallel", "arbitrary"),
                vmem_limit_bytes=vmem_limit,
            ),
            cost_estimate=cost,
        )(x2d, w1c, b1r, w2c, b2r, gamma_r, beta_r)

    try:
        out2d = _call(True)
    except (TypeError, ValueError, NotImplementedError, pltpu.LoweringException):
        # Only the pl.Buffered pipeline hints differ between the two calls, so a genuine
        # shape / lowering error re-raises from this hint-free fallback as well.
        out2d = _call(False)

    if n_pad != N or D_pad != D:
        out2d = out2d[:N, :D]
    return out2d.reshape(B, S, D)


# ---------------- references ----------------

def _reference_f32(x, w1, b1, w2, b2, gamma, beta, eps=1e-5):
    h = jnp.maximum(x @ w1 + b1, 0.0)
    y = h @ w2 + b2 + x
    mean = jnp.mean(y, axis=-1, keepdims=True)
    var = jnp.mean((y - mean) ** 2, axis=-1, keepdims=True)
    return (y - mean) * jax.lax.rsqrt(var + eps) * gamma + beta


def _reference_matched(x, w1, b1, w2, b2, gamma, beta, eps=1e-5,
                       matmul_dtype=jnp.bfloat16):
    # Mirrors the kernel's mixed precision: bf16 MXU operands, f32 accumulation / LN.
    h = jnp.dot(x.astype(matmul_dtype), w1.astype(matmul_dtype),
                preferred_element_type=jnp.float32) + b1
    h = jnp.maximum(h, 0.0)
    y = jnp.dot(h.astype(matmul_dtype), w2.astype(matmul_dtype),
                preferred_element_type=jnp.float32) + b2 + x
    mean = jnp.mean(y, axis=-1, keepdims=True)
    var = jnp.mean((y - mean) ** 2, axis=-1, keepdims=True)
    return (y - mean) * jax.lax.rsqrt(var + eps) * gamma + beta


if __name__ == "__main__":
    key = jax.random.PRNGKey(0)

    def make_params(k, D, H):
        k1, k2, k3, k4, k5, k6 = jax.random.split(k, 6)
        w1 = jax.random.normal(k1, (D, H), jnp.float32) * 0.1
        b1 = jax.random.normal(k2, (H,), jnp.float32) * 0.1
        w2 = jax.random.normal(k3, (H, D), jnp.float32) * 0.1
        b2 = jax.random.normal(k4, (D,), jnp.float32) * 0.1
        gamma = 1.0 + 0.1 * jax.random.normal(k5, (D,), jnp.float32)
        beta = 0.1 * jax.random.normal(k6, (D,), jnp.float32)
        return w1, b1, w2, b2, gamma, beta

    # Config 1: toy module shapes, auto tiling (fully-resident weights, D padded to 128).
    kx, kp, key = jax.random.split(key, 3)
    B, S, D, H = 2, 8, 32, 64
    x = jax.random.normal(kx, (B, S, D), jnp.float32)
    params = make_params(kp, D, H)
    out = jax.block_until_ready(position_wise_feed_forward(x, *params))
    assert out.shape == x.shape
    assert jnp.allclose(out, _reference_matched(x, *params), atol=2e-3, rtol=2e-3)
    assert jnp.allclose(out, _reference_f32(x, *params), atol=3e-2, rtol=3e-2)

    # Config 2: lane-dense D=128, explicit small tiles with an H-tiled reduction axis ->
    # exercises the accumulator / pl.when init-finalize path and the hoisted-cast scratch.
    kx, kp = jax.random.split(key)
    B, S, D, H = 4, 60, 128, 256
    x = jax.random.normal(kx, (B, S, D), jnp.float32)
    params = make_params(kp, D, H)
    out = jax.block_until_ready(
        position_wise_feed_forward(x, *params, row_tile=64, hidden_tile=128))
    assert out.shape == x.shape
    assert jnp.allclose(out, _reference_matched(x, *params), atol=2e-3, rtol=2e-3)
    assert jnp.allclose(out, _reference_f32(x, *params), atol=3e-2, rtol=3e-2)

    print("KERNEL_OK")
</pallas_src>

<mosaic_0001>
module attributes {stable_mosaic.version = 11 : i64} {
  func.func @_ffn_kernel(%arg0: i32, %arg1: i32, %arg2: memref<16x128xf32, #tpu.memory_space<vmem>>, %arg3: memref<128x64xbf16, #tpu.memory_space<vmem>>, %arg4: memref<1x64xf32, #tpu.memory_space<vmem>>, %arg5: memref<64x128xbf16, #tpu.memory_space<vmem>>, %arg6: memref<1x128xf32, #tpu.memory_space<vmem>>, %arg7: memref<1x128xf32, #tpu.memory_space<vmem>>, %arg8: memref<1x128xf32, #tpu.memory_space<vmem>>, %arg9: memref<16x128xf32, #tpu.memory_space<vmem>>, %arg10: memref<16x128xf32, #tpu.memory_space<vmem>>) attributes {dimension_semantics = [#tpu.dimension_semantics<parallel>, #tpu.dimension_semantics<arbitrary>], iteration_bounds = array<i64: 1, 1>, scalar_prefetch = 0 : i64, scratch_operands = 1 : i64, tpu.core_type = #tpu.core_type<tc>, window_params = [{transform_indices = @transform_0, window_bounds = array<i64: 16, 128>}, {pipeline_mode = #tpu.pipeline_mode<synchronous>, transform_indices = @transform_1, window_bounds = array<i64: 128, 64>}, {pipeline_mode = #tpu.pipeline_mode<synchronous>, transform_indices = @transform_2, window_bounds = array<i64: 1, 64>}, {pipeline_mode = #tpu.pipeline_mode<synchronous>, transform_indices = @transform_3, window_bounds = array<i64: 64, 128>}, {pipeline_mode = #tpu.pipeline_mode<synchronous>, transform_indices = @transform_4, window_bounds = array<i64: 1, 128>}, {pipeline_mode = #tpu.pipeline_mode<synchronous>, transform_indices = @transform_5, window_bounds = array<i64: 1, 128>}, {pipeline_mode = #tpu.pipeline_mode<synchronous>, transform_indices = @transform_6, window_bounds = array<i64: 1, 128>}, {transform_indices = @transform_7, window_bounds = array<i64: 16, 128>}]} {
    %c0_i32 = arith.constant 0 : i32
    %0 = arith.cmpi eq, %arg1, %c0_i32 : i32
    %1 = arith.extui %0 : i1 to i32
    %c0_i32_0 = arith.constant 0 : i32
    %2 = arith.cmpi ne, %1, %c0_i32_0 : i32
    scf.if %2 {
      %cst_16 = arith.constant 0.000000e+00 : f32
      %21 = vector.broadcast %cst_16 : f32 to vector<16x128xf32>
      %c0_17 = arith.constant 0 : index
      %c0_18 = arith.constant 0 : index
      %22 = vector.load %arg10[%c0_17, %c0_18] : memref<16x128xf32, #tpu.memory_space<vmem>>, vector<16x128xf32>
      tpu.vector_store %arg10[%c0_17, %c0_18], %21 {strides = array<i32>} : memref<16x128xf32, #tpu.memory_space<vmem>>, vector<16x128xf32>,
    } else {
    }
    %c0 = arith.constant 0 : index
    %c0_1 = arith.constant 0 : index
    %3 = vector.load %arg2[%c0, %c0_1] : memref<16x128xf32, #tpu.memory_space<vmem>>, vector<16x128xf32>
    %4 = arith.truncf %3 : vector<16x128xf32> to vector<16x128xbf16>
    %c0_2 = arith.constant 0 : index
    %c0_3 = arith.constant 0 : index
    %5 = vector.load %arg3[%c0_2, %c0_3] : memref<128x64xbf16, #tpu.memory_space<vmem>>, vector<128x64xbf16>
    %cst = arith.constant dense<0.000000e+00> : vector<16x64xf32>
    %6 = tpu.matmul %4, %5, %cst {dimension_numbers = #tpu.dot_dimension_numbers<[1], [0], [0], [1], [0, 0, 1, 1], [], []>} : vector<16x128xbf16>, vector<128x64xbf16>, vector<16x64xf32> -> vector<16x64xf32>
    %c0_4 = arith.constant 0 : index
    %c0_5 = arith.constant 0 : index
    %7 = vector.load %arg4[%c0_4, %c0_5] : memref<1x64xf32, #tpu.memory_space<vmem>>, vector<1x64xf32>
    %8 = vector.broadcast %7 : vector<1x64xf32> to vector<16x64xf32>
    %9 = arith.addf %6, %8 : vector<16x64xf32>
    %cst_6 = arith.constant 0.000000e+00 : f32
    %10 = vector.broadcast %cst_6 : f32 to vector<16x64xf32>
    %11 = arith.maximumf %9, %10 : vector<16x64xf32>
    %c0_7 = arith.constant 0 : index
    %c0_8 = arith.constant 0 : index
    %12 = vector.load %arg10[%c0_7, %c0_8] : memref<16x128xf32, #tpu.memory_space<vmem>>, vector<16x128xf32>
    %13 = arith.truncf %11 : vector<16x64xf32> to vector<16x64xbf16>
    %c0_9 = arith.constant 0 : index
    %c0_10 = arith.constant 0 : index
    %14 = vector.load %arg5[%c0_9, %c0_10] : memref<64x128xbf16, #tpu.memory_space<vmem>>, vector<64x128xbf16>
    %cst_11 = arith.constant dense<0.000000e+00> : vector<16x128xf32>
    %15 = tpu.matmul %13, %14, %cst_11 {dimension_numbers = #tpu.dot_dimension_numbers<[1], [0], [0], [1], [0, 0, 1, 1], [], []>} : vector<16x64xbf16>, vector<64x128xbf16>, vector<16x128xf32> -> vector<16x128xf32>
    %16 = arith.addf %12, %15 : vector<16x128xf32>
    %c0_12 = arith.constant 0 : index
    %c0_13 = arith.constant 0 : index
    %17 = vector.load %arg10[%c0_12, %c0_13] : memref<16x128xf32, #tpu.memory_space<vmem>>, vector<16x128xf32>
    tpu.vector_store %arg10[%c0_12, %c0_13], %16 {strides = array<i32>} : memref<16x128xf32, #tpu.memory_space<vmem>>, vector<16x128xf32>,
    %c0_i32_14 = arith.constant 0 : i32
    %18 = arith.cmpi eq, %arg1, %c0_i32_14 : i32
    %19 = arith.extui %18 : i1 to i32
    %c0_i32_15 = arith.constant 0 : i32
    %20 = arith.cmpi ne, %19, %c0_i32_15 : i32
    scf.if %20 {
      %c0_16 = arith.constant 0 : index
      %c0_17 = arith.constant 0 : index
      %21 = vector.load %arg10[%c0_16, %c0_17] : memref<16x128xf32, #tpu.memory_space<vmem>>, vector<16x128xf32>
      %c0_18 = arith.constant 0 : index
      %c0_19 = arith.constant 0 : index
      %22 = vector.load %arg6[%c0_18, %c0_19] : memref<1x128xf32, #tpu.memory_space<vmem>>, vector<1x128xf32>
      %23 = vector.broadcast %22 : vector<1x128xf32> to vector<16x128xf32>
      %24 = arith.addf %21, %23 : vector<16x128xf32>
      %c0_20 = arith.constant 0 : index
      %c0_21 = arith.constant 0 : index
      %25 = vector.load %arg2[%c0_20, %c0_21] : memref<16x128xf32, #tpu.memory_space<vmem>>, vector<16x128xf32>
      %26 = arith.addf %24, %25 : vector<16x128xf32>
      %cst_22 = arith.constant dense<0.000000e+00> : vector<16xf32>
      %27 = vector.multi_reduction <add>, %26, %cst_22 [1] : vector<16x128xf32> to vector<16xf32>
      %28 = vector.shape_cast %27 : vector<16xf32> to vector<16x1xf32>
      %29 = arith.mulf %26, %26 : vector<16x128xf32>
      %cst_23 = arith.constant dense<0.000000e+00> : vector<16xf32>
      %30 = vector.multi_reduction <add>, %29, %cst_23 [1] : vector<16x128xf32> to vector<16xf32>
      %31 = vector.shape_cast %30 : vector<16xf32> to vector<16x1xf32>
      %cst_24 = arith.constant 3.125000e-02 : f32
      %32 = vector.broadcast %cst_24 : f32 to vector<16x1xf32>
      %33 = arith.mulf %28, %32 : vector<16x1xf32>
      %cst_25 = arith.constant 3.125000e-02 : f32
      %34 = vector.broadcast %cst_25 : f32 to vector<16x1xf32>
      %35 = arith.mulf %31, %34 : vector<16x1xf32>
      %36 = arith.mulf %33, %33 : vector<16x1xf32>
      %37 = arith.subf %35, %36 : vector<16x1xf32>
      %cst_26 = arith.constant 0.000000e+00 : f32
      %38 = vector.broadcast %cst_26 : f32 to vector<16x1xf32>
      %39 = arith.maximumf %37, %38 : vector<16x1xf32>
      %40 = vector.broadcast %33 : vector<16x1xf32> to vector<16x128xf32>
      %41 = arith.subf %26, %40 : vector<16x128xf32>
      %cst_27 = arith.constant 9.99999974E-6 : f32
      %42 = vector.broadcast %cst_27 : f32 to vector<16x1xf32>
      %43 = arith.addf %39, %42 : vector<16x1xf32>
      %44 = math.rsqrt %43 : vector<16x1xf32>
      %45 = vector.broadcast %44 : vector<16x1xf32> to vector<16x128xf32>
      %46 = arith.mulf %41, %45 : vector<16x128xf32>
      %c0_28 = arith.constant 0 : index
      %c0_29 = arith.constant 0 : index
      %47 = vector.load %arg7[%c0_28, %c0_29] : memref<1x128xf32, #tpu.memory_space<vmem>>, vector<1x128xf32>
      %48 = vector.broadcast %47 : vector<1x128xf32> to vector<16x128xf32>
      %49 = arith.mulf %46, %48 : vector<16x128xf32>
      %c0_30 = arith.constant 0 : index
      %c0_31 = arith.constant 0 : index
      %50 = vector.load %arg8[%c0_30, %c0_31] : memref<1x128xf32, #tpu.memory_space<vmem>>, vector<1x128xf32>
      %51 = vector.broadcast %50 : vector<1x128xf32> to vector<16x128xf32>
      %52 = arith.addf %49, %51 : vector<16x128xf32>
      %c0_32 = arith.constant 0 : index
      %c0_33 = arith.constant 0 : index
      %53 = vector.load %arg9[%c0_32, %c0_33] : memref<16x128xf32, #tpu.memory_space<vmem>>, vector<16x128xf32>
      tpu.vector_store %arg9[%c0_32, %c0_33], %52 {strides = array<i32>} : memref<16x128xf32, #tpu.memory_space<vmem>>, vector<16x128xf32>,
    } else {
    }
    return
  }
  func.func @transform_0(%arg0: i32, %arg1: i32) -> (i32, i32) {
    %c0_i32 = arith.constant 0 : i32
    %c0_i32_0 = arith.constant 0 : i32
    return %arg0, %c0_i32 : i32, i32
  }
  func.func @transform_1(%arg0: i32, %arg1: i32) -> (i32, i32) {
    %c0_i32 = arith.constant 0 : i32
    %c0_i32_0 = arith.constant 0 : i32
    return %c0_i32, %arg1 : i32, i32
  }
  func.func @transform_2(%arg0: i32, %arg1: i32) -> (i32, i32) {
    %c0_i32 = arith.constant 0 : i32
    %c0_i32_0 = arith.constant 0 : i32
    return %c0_i32, %arg1 : i32, i32
  }
  func.func @transform_3(%arg0: i32, %arg1: i32) -> (i32, i32) {
    %c0_i32 = arith.constant 0 : i32
    %c0_i32_0 = arith.constant 0 : i32
    return %arg1, %c0_i32 : i32, i32
  }
  func.func @transform_4(%arg0: i32, %arg1: i32) -> (i32, i32) {
    %c0_i32 = arith.constant 0 : i32
    %c0_i32_0 = arith.constant 0 : i32
    %c0_i32_1 = arith.constant 0 : i32
    return %c0_i32, %c0_i32_0 : i32, i32
  }
  func.func @transform_5(%arg0: i32, %arg1: i32) -> (i32, i32) {
    %c0_i32 = arith.constant 0 : i32
    %c0_i32_0 = arith.constant 0 : i32
    %c0_i32_1 = arith.constant 0 : i32
    return %c0_i32, %c0_i32_0 : i32, i32
  }
  func.func @transform_6(%arg0: i32, %arg1: i32) -> (i32, i32) {
    %c0_i32 = arith.constant 0 : i32
    %c0_i32_0 = arith.constant 0 : i32
    %c0_i32_1 = arith.constant 0 : i32
    return %c0_i32, %c0_i32_0 : i32, i32
  }
  func.func @transform_7(%arg0: i32, %arg1: i32) -> (i32, i32) {
    %c0_i32 = arith.constant 0 : i32
    %c0_i32_0 = arith.constant 0 : i32
    return %arg0, %c0_i32 : i32, i32
  }
}

</mosaic_0001>

<llo_original>
// kernel: tpu_custom_call.1
$region0: #{tpu_custom_call.1}
  #allocation0 [shape = 'u32[]', space=smem, size = 0x4, offset = 0x4, fixed_abs, tag = 'smem constant byte address 0x4 - core index']
  #allocation1 [shape = 'u32[144,128]{1,0:T(1,128)}', space=vmem, size = 0x12000, scoped, tag = 'internal scratch']
  #allocation2 [shape = 'f32[16,128]{1,0:T(8,128)}', space=vmem, size = 0x2000, scoped, tag = 'scratch operand']
  %s0 = inlined_call_operand.vmem [shape: f32[16,128], index: 0, kind: input, shape index: {}]
  %s1 = inlined_call_operand.vmem [shape: bf16[128,64], index: 1, kind: input, shape index: {}]
  %s2 = inlined_call_operand.vmem [shape: f32[1,64], index: 2, kind: input, shape index: {}]
  %s3 = inlined_call_operand.vmem [shape: bf16[64,128], index: 3, kind: input, shape index: {}]
  %s4 = inlined_call_operand.vmem [shape: f32[1,128], index: 4, kind: input, shape index: {}]
  %s5 = inlined_call_operand.vmem [shape: f32[1,128], index: 5, kind: input, shape index: {}]
  %s6 = inlined_call_operand.vmem [shape: f32[1,128], index: 6, kind: input, shape index: {}]
  %s7 = inlined_call_operand.hbm [shape: f32[16,128], index: 7, kind: output, shape index: {}]
  %s8 = sld [smem:[#allocation0]]
  $region46: #{tpu_custom_call.1} parent=0
    _
  %s10 = ssub.s32 1, %s8
  %s11 = scalar_select 0, %s10, %s8
  $region1: #{tpu_custom_call.1} parent=0
    #allocation3 [shape = 'u8[8192]{0}', space=vmem, size = 0x2000, scoped, tag = 'output window, operand 0, single buffered']
    #allocation4 [shape = 's32[1]{0}', space=sflag, size = 0x4, scoped, tag = 'scoped memory for tpu_custom_call.1']
    %12 = vsyncpa [#allocation4], 0
    // Predicated region
    $region2: #{tpu_custom_call.1} parent=1 // pred_check
      _
    $region3: #{tpu_custom_call.1} parent=1 // pred_check_branch
      %14 = sbr.rel (0) target = $region5
    $region4: #{tpu_custom_call.1} parent=1 // pred_region
      _
    $region5: #{tpu_custom_call.1} parent=1 // pred_fallthru
      _
    // Predicated region
    $region6: #{tpu_custom_call.1} parent=1 // pred_check
      _
    $region7: #{tpu_custom_call.1} parent=1 // pred_check_branch
      %16 = sbr.rel (0) target = $region9
    $region8: #{tpu_custom_call.1} parent=1 // pred_region
      _
    $region9: #{tpu_custom_call.1} parent=1 // pred_fallthru
      _
    // Predicated region
    $region10: #{tpu_custom_call.1} parent=1 // pred_check
      _
    $region11: #{tpu_custom_call.1} parent=1 // pred_check_branch
      %18 = sbr.rel (0) target = $region13
    $region12: #{tpu_custom_call.1} parent=1 // pred_region
      _
    $region13: #{tpu_custom_call.1} parent=1 // pred_fallthru
      _
    // Predicated region
    $region14: #{tpu_custom_call.1} parent=1 // pred_check
      _
    $region15: #{tpu_custom_call.1} parent=1 // pred_check_branch
      %20 = sbr.rel (0) target = $region17
    $region16: #{tpu_custom_call.1} parent=1 // pred_region
      _
    $region17: #{tpu_custom_call.1} parent=1 // pred_fallthru
      _
    // Predicated region
    $region18: #{tpu_custom_call.1} parent=1 // pred_check
      _
    $region19: #{tpu_custom_call.1} parent=1 // pred_check_branch
      %22 = sbr.rel (0) target = $region21
    $region20: #{tpu_custom_call.1} parent=1 // pred_region
      _
    $region21: #{tpu_custom_call.1} parent=1 // pred_fallthru
      _
    // Predicated region
    $region22: #{tpu_custom_call.1} parent=1 // pred_check
      _
    $region23: #{tpu_custom_call.1} parent=1 // pred_check_branch
      %24 = sbr.rel (0) target = $region25
    $region24: #{tpu_custom_call.1} parent=1 // pred_region
      _
    $region25: #{tpu_custom_call.1} parent=1 // pred_fallthru
      _
    // Predicated region
    $region26: #{tpu_custom_call.1} parent=1 // pred_check
      _
    $region27: #{tpu_custom_call.1} parent=1 // pred_check_branch
      %26 = sbr.rel (0) target = $region29
    $region28: #{tpu_custom_call.1} parent=1 // pred_region
      _
    $region29: #{tpu_custom_call.1} parent=1 // pred_fallthru
      _
    %p28 = scmp.eq.s32.totalorder 0, 0
    // Predicated region
    $region30: #{tpu_custom_call.1} parent=1 // pred_check
      %p29 = pneg %p28
    $region31: #{tpu_custom_call.1} parent=1 // pred_check_branch
      %31 = sbr.rel (%p29) target = $region33
    $region32: #{tpu_custom_call.1} parent=1 // pred_region
      %32 = vst [vmem:[#allocation2] sm:$0xff] 0.0
      %33 = vst [vmem:[#allocation2 + $0x8] sm:$0xff] 0.0
    $region33: #{tpu_custom_call.1} parent=1 // pred_fallthru
      _
    %v34 = vld [vmem:[%s0] sm:$0xff]
    %v35 = vld [vmem:[%s0 + $0x8] sm:$0xff]
    %v36 = vpack.c.bf16 %v35, %v34
    %v37 = vld [vmem:[%s1] sm:$0xf]
    %v38 = vld [vmem:[%s1 + $0x4] sm:$0xf]
    %v39 = vld [vmem:[%s1 + $0x8] sm:$0xf]
    %v40 = vld [vmem:[%s1 + $0xc] sm:$0xf]
    %v41 = vld [vmem:[%s1 + $0x10] sm:$0xf]
    %v42 = vld [vmem:[%s1 + $0x14] sm:$0xf]
    %v43 = vld [vmem:[%s1 + $0x18] sm:$0xf]
    %v44 = vld [vmem:[%s1 + $0x1c] sm:$0xf]
    %v45 = vld [vmem:[%s1 + $0x20] sm:$0xf]
    %v46 = vld [vmem:[%s1 + $0x24] sm:$0xf]
    %v47 = vld [vmem:[%s1 + $0x28] sm:$0xf]
    %v48 = vld [vmem:[%s1 + $0x2c] sm:$0xf]
    %v49 = vld [vmem:[%s1 + $0x30] sm:$0xf]
    %v50 = vld [vmem:[%s1 + $0x34] sm:$0xf]
    %v51 = vld [vmem:[%s1 + $0x38] sm:$0xf]
    %v52 = vld [vmem:[%s1 + $0x3c] sm:$0xf]
    %v53 = vld [vmem:[%s2] sm:$0x1]
    %v55 = vlaneseq
    %v56 = vshrl.u32 %v55, 7
    %v57 = vsub.s32 0, %v56
    %v58 = vrot.slane %v53, %v57
    %v76 = vunpack.c.l.b16 %v37
    %v77 = vunpack.c.l.b16 %v38
    %v78 = vunpack.c.l.b16 %v39
    %v79 = vunpack.c.l.b16 %v40
    %v80 = vunpack.c.l.b16 %v41
    %v81 = vunpack.c.l.b16 %v42
    %v82 = vunpack.c.l.b16 %v43
    %v83 = vunpack.c.l.b16 %v44
    %v84 = vunpack.c.l.b16 %v45
    %v85 = vunpack.c.l.b16 %v46
    %v86 = vunpack.c.l.b16 %v47
    %v87 = vunpack.c.l.b16 %v48
    %v88 = vunpack.c.l.b16 %v49
    %v89 = vunpack.c.l.b16 %v50
    %v90 = vunpack.c.l.b16 %v51
    %v91 = vunpack.c.l.b16 %v52
    %v92 = vpack.c.b16 %v77, %v76
    %v93 = vpack.c.b16 %v79, %v78
    %v94 = vpack.c.b16 %v81, %v80
    %v95 = vpack.c.b16 %v83, %v82
    %v96 = vpack.c.b16 %v85, %v84
    %v97 = vpack.c.b16 %v87, %v86
    %v98 = vpack.c.b16 %v89, %v88
    %v99 = vpack.c.b16 %v91, %v90
    %108 = vmatprep.subr.bf16.mxu0 0
    %109 = vmatpush1.bf16.msra.mxu0 %v92
    %110 = vmatprep.subr.bf16.mxu0 0
    %111 = vmatpush1.bf16.msra.mxu0 %v93
    %112 = vmatprep.subr.bf16.mxu0 0
    %113 = vmatpush1.bf16.msra.mxu0 %v94
    %114 = vmatprep.subr.bf16.mxu0 0
    %115 = vmatpush1.bf16.msra.mxu0 %v95
    %116 = vmatprep.subr.bf16.mxu0 0
    %117 = vmatpush1.bf16.msra.mxu0 %v96
    %118 = vmatprep.subr.bf16.mxu0 0
    %119 = vmatpush1.bf16.msra.mxu0 %v97
    %120 = vmatprep.subr.bf16.mxu0 0
    %121 = vmatpush1.bf16.msra.mxu0 %v98
    %122 = vmatprep.subr.bf16.mxu0 0
    %123 = vmatpush1.bf16.msra.mxu0 %v99
    %124 = vmatprep.subr.bf16.mxu0 0
    %125 = vmatpush1.bf16.msra.mxu0 0
    %126 = vmatprep.subr.bf16.mxu0 0
    %127 = vmatpush1.bf16.msra.mxu0 0
    %128 = vmatprep.subr.bf16.mxu0 0
    %129 = vmatpush1.bf16.msra.mxu0 0
    %130 = vmatprep.subr.bf16.mxu0 0
    %131 = vmatpush1.bf16.msra.mxu0 0
    %132 = vmatprep.subr.bf16.mxu0 0
    %133 = vmatpush1.bf16.msra.mxu0 0
    %134 = vmatprep.subr.bf16.mxu0 0
    %135 = vmatpush1.bf16.msra.mxu0 0
    %136 = vmatprep.subr.bf16.mxu0 0
    %137 = vmatpush1.bf16.msra.mxu0 0
    %138 = vmatprep.subr.bf16.mxu0 0
    %139 = vmatpush1.bf16.msra.mxu0 0
    %140 = vmatprep.mubr.bf16.mxu0 0
    %141 = vmatmul.mubr.bf16.gmra.mrb[0].mxu0 %v36
    %v142 = vpop.f32.mrb[0].mxu0
    %v143 = vadd.f32 %v58, %v142
    %v144 = vpop.f32.mrb[0].mxu0
    %v145 = vpop.f32.mrb[0].mxu0
    %v146 = vadd.f32 %v58, %v145
    %v147 = vpop.f32.mrb[0].mxu0
    %148 = vdwg.mxu0
    %v149 = vmax.f32 %v143, 0.0
    %v150 = vmax.f32 %v146, 0.0
    %v151 = vld [vmem:[#allocation2] sm:$0xff]
    %v152 = vld [vmem:[#allocation2 + $0x8] sm:$0xff]
    %v153 = vpack.c.bf16 %v150, %v149
    %v154 = vld [vmem:[%s3] sm:$0xf]
    %v155 = vld [vmem:[%s3 + $0x4] sm:$0xf]
    %v156 = vld [vmem:[%s3 + $0x8] sm:$0xf]
    %v157 = vld [vmem:[%s3 + $0xc] sm:$0xf]
    %v158 = vld [vmem:[%s3 + $0x10] sm:$0xf]
    %v159 = vld [vmem:[%s3 + $0x14] sm:$0xf]
    %v160 = vld [vmem:[%s3 + $0x18] sm:$0xf]
    %v161 = vld [vmem:[%s3 + $0x1c] sm:$0xf]
    %v170 = vunpack.c.l.b16 %v154
    %v171 = vunpack.c.l.b16 %v155
    %v172 = vunpack.c.l.b16 %v156
    %v173 = vunpack.c.l.b16 %v157
    %v174 = vunpack.c.l.b16 %v158
    %v175 = vunpack.c.l.b16 %v159
    %v176 = vunpack.c.l.b16 %v160
    %v177 = vunpack.c.l.b16 %v161
    %v178 = vpack.c.b16 %v171, %v170
    %v179 = vpack.c.b16 %v173, %v172
    %v180 = vpack.c.b16 %v175, %v174
    %v181 = vpack.c.b16 %v177, %v176
    %vm186 = vcmask 523264
    %v188 = vsel %vm186, %v153, 0
    %190 = vmatprep.subr.bf16.mxu0 0
    %191 = vmatpush1.bf16.msra.mxu0 %v178
    %192 = vmatprep.subr.bf16.mxu0 0
    %193 = vmatpush1.bf16.msra.mxu0 %v179
    %194 = vmatprep.subr.bf16.mxu0 0
    %195 = vmatpush1.bf16.msra.mxu0 %v180
    %196 = vmatprep.subr.bf16.mxu0 0
    %197 = vmatpush1.bf16.msra.mxu0 %v181
    %198 = vmatprep.subr.bf16.mxu0 0
    %199 = vmatpush1.bf16.msra.mxu0 0
    %200 = vmatprep.subr.bf16.mxu0 0
    %201 = vmatpush1.bf16.msra.mxu0 0
    %202 = vmatprep.subr.bf16.mxu0 0
    %203 = vmatpush1.bf16.msra.mxu0 0
    %204 = vmatprep.subr.bf16.mxu0 0
    %205 = vmatpush1.bf16.msra.mxu0 0
    %206 = vmatprep.subr.bf16.mxu0 0
    %207 = vmatpush1.bf16.msra.mxu0 0
    %208 = vmatprep.subr.bf16.mxu0 0
    %209 = vmatpush1.bf16.msra.mxu0 0
    %210 = vmatprep.subr.bf16.mxu0 0
    %211 = vmatpush1.bf16.msra.mxu0 0
    %212 = vmatprep.subr.bf16.mxu0 0
    %213 = vmatpush1.bf16.msra.mxu0 0
    %214 = vmatprep.subr.bf16.mxu0 0
    %215 = vmatpush1.bf16.msra.mxu0 0
    %216 = vmatprep.subr.bf16.mxu0 0
    %217 = vmatpush1.bf16.msra.mxu0 0
    %218 = vmatprep.subr.bf16.mxu0 0
    %219 = vmatpush1.bf16.msra.mxu0 0
    %220 = vmatprep.subr.bf16.mxu0 0
    %221 = vmatpush1.bf16.msra.mxu0 0
    %222 = vmatprep.mubr.bf16.mxu0 0
    %223 = vmatmul.mubr.bf16.gmra.mrb[0].mxu0 %v188
    %v224 = vpop.f32.mrb[0].mxu0
    %v225 = vadd.f32 0.0, %v224
    %v226 = vpop.f32.mrb[0].mxu0
    %v227 = vpop.f32.mrb[0].mxu0
    %v228 = vadd.f32 0.0, %v227
    %v229 = vpop.f32.mrb[0].mxu0
    %230 = vdwg.mxu0
    %v231 = vadd.f32 %v151, %v225
    %v232 = vadd.f32 %v152, %v228
    %233 = vst [vmem:[#allocation2] sm:$0xff] %v231
    %234 = vst [vmem:[#allocation2 + $0x8] sm:$0xff] %v232
    // Predicated region
    $region34: #{tpu_custom_call.1} parent=1 // pred_check
      %p235 = pneg %p28
    $region35: #{tpu_custom_call.1} parent=1 // pred_check_branch
      %237 = sbr.rel (%p235) target = $region37
    $region36: #{tpu_custom_call.1} parent=1 // pred_region
      %v238 = vld [vmem:[#allocation2] sm:$0xff]
      %v239 = vld [vmem:[#allocation2 + $0x8] sm:$0xff]
      %v240 = vld [vmem:[%s4] sm:$0x1]
      %v242 = vlaneseq
      %v243 = vshrl.u32 %v242, 7
      %v244 = vsub.s32 0, %v243
      %v245 = vrot.slane %v240, %v244
      %v247 = vadd.f32 %v238, %v245
      %v248 = vadd.f32 %v239, %v245
      %v249 = vld [vmem:[%s0] sm:$0xff]
      %v250 = vld [vmem:[%s0 + $0x8] sm:$0xff]
      %v251 = vadd.f32 %v247, %v249
      %v252 = vadd.f32 %v248, %v250
      %253 = vadd.xlane.f32.xlu0 %v251
      %v254 = vpop.xlane.xlu0 %253
      %255 = vadd.xlane.f32.xlu0 %v252
      %v256 = vpop.xlane.xlu0 %255
      %v257 = vmul.f32 %v251, %v251
      %v258 = vmul.f32 %v252, %v252
      %259 = vadd.xlane.f32.xlu0 %v257
      %v260 = vpop.xlane.xlu0 %259
      %261 = vadd.xlane.f32.xlu0 %v258
      %v262 = vpop.xlane.xlu0 %261
      %v263 = vmul.f32 %v254, 0.03125
      %v264 = vmul.f32 %v256, 0.03125
      %v265 = vmul.f32 %v260, 0.03125
      %v266 = vmul.f32 %v262, 0.03125
      %v267 = vmul.f32 %v263, %v263
      %v268 = vmul.f32 %v264, %v264
      %v269 = vsub.f32 %v265, %v267
      %v270 = vsub.f32 %v266, %v268
      %v271 = vmax.f32 %v269, 0.0
      %v272 = vmax.f32 %v270, 0.0
      %v273 = vsub.f32 %v251, %v263
      %v274 = vsub.f32 %v252, %v264
      %v275 = vadd.f32 %v271, 1e-05
      %v276 = vadd.f32 %v272, 1e-05
      %v277 = vrsqrt.pop %v275
      %v278 = vrsqrt.pop %v276
      %v279 = vmul.f32 %v273, %v277
      %v280 = vmul.f32 %v274, %v278
      %v281 = vld [vmem:[%s5] sm:$0x1]
      %v283 = vlaneseq
      %v284 = vshrl.u32 %v283, 7
      %v285 = vsub.s32 0, %v284
      %v286 = vrot.slane %v281, %v285
      %v288 = vmul.f32 %v279, %v286
      %v289 = vmul.f32 %v280, %v286
      %v290 = vld [vmem:[%s6] sm:$0x1]
      %v292 = vlaneseq
      %v293 = vshrl.u32 %v292, 7
      %v294 = vsub.s32 0, %v293
      %v295 = vrot.slane %v290, %v294
      %v297 = vadd.f32 %v288, %v295
      %v298 = vadd.f32 %v289, %v295
      %299 = vst [vmem:[#allocation3] sm:$0xff] %v297
      %300 = vst [vmem:[#allocation3 + $0x8] sm:$0xff] %v298
    $region37: #{tpu_custom_call.1} parent=1 // pred_fallthru
      _
    // Predicated region
    $region38: #{tpu_custom_call.1} parent=1 // pred_check
      _
    $region39: #{tpu_custom_call.1} parent=1 // pred_check_branch
      %302 = sbr.rel (0) target = $region41
    $region40: #{tpu_custom_call.1} parent=1 // pred_region
      %s304 = ssub.s32 256, 256
      %305 = vsyncadd [#allocation4], %s304
      %s306 = sshll.u32 [#allocation3], 4
      %s307 = int_to_ptr.vmem [resolvable:$true] %s306
      %312 = dma.vmem_to_hbm [thread:$0]  %s307, 256, %s7, [#allocation4], 128, 128, 8
    $region41: #{tpu_custom_call.1} parent=1 // pred_fallthru
      _
    // Predicated region
    $region42: #{tpu_custom_call.1} parent=1 // pred_check
      _
    $region43: #{tpu_custom_call.1} parent=1 // pred_check_branch
      %314 = sbr.rel (0) target = $region45
    $region44: #{tpu_custom_call.1} parent=1 // pred_region
      %315 = dma.done [#allocation4], 256
    $region45: #{tpu_custom_call.1} parent=1 // pred_fallthru
      _
    %316 = vsyncpa [#allocation4], 1

</llo_original>
